<compile_context>
chip_gen: v7x
topology: tpu7x:2x2x1
jax: 0.10.0
libtpu: 0.0.40
codegen_flags: <defaults>
</compile_context>

<pallas_src>
import functools

import jax
import jax.numpy as jnp
import numpy as np
from jax import lax
from jax.experimental import pallas as pl
from jax.experimental.pallas import tpu as pltpu


# ----------------------------------------------------------------------------
# Helpers
# ----------------------------------------------------------------------------
def _round_up(x, m):
    return ((x + m - 1) // m) * m


def _pad_to(a, shape):
    return jnp.pad(a, [(0, t - s) for s, t in zip(a.shape, shape)])


def _tpu_params():
    """(vmem_limit_bytes, tensorcore_count) — generation-aware with safe fallbacks.

    v7x:     64 MiB physical VMEM per TC, 2 TCs/chip -> request ~48 MiB, split outer.
    v5e/v6e: 128 MiB physical, 1 TC                  -> request ~100 MiB, no split.
    """
    phys_vmem = 128 << 20
    cores = None
    try:
        info = pltpu.get_tpu_info()
        phys_vmem = int(getattr(info, "vmem_capacity_bytes", phys_vmem))
        for attr in ("num_tensorcores", "tensorcore_count", "num_cores",
                     "cores_per_chip", "core_count"):
            v = getattr(info, attr, None)
            if isinstance(v, (int, np.integer)) and int(v) > 0:
                cores = int(v)
                break
    except Exception:  # non-TPU backend / interpret mode / API drift
        pass
    if cores is None:
        # Heuristic: v7x exposes 64 MiB VMEM per TC and has 2 TCs per chip.
        cores = 2 if phys_vmem <= (64 << 20) else 1
    cores = 2 if cores >= 2 else 1
    vmem_limit = min(phys_vmem - (16 << 20), 100 << 20)   # headroom below physical
    vmem_limit = max(int(vmem_limit), 32 << 20)
    return vmem_limit, cores


def _choose_row_block(m, k, cdims, vmem_limit):
    """Rows per block: multiple of 16 (bf16 sublanes) and of 8*K (group-aligned max
    pass with a sublane-aligned group count).  Sized from the real per-step live set
    (double-buffered bf16 x/h streams + double-buffered bf16 weights + stats block)
    against the granted VMEM, targeting ~2K rows per block."""
    base = int(np.lcm(8 * int(k), 16))
    budget = 0.70 * float(vmem_limit)            # headroom for compiler scratch

    rows = []
    n = len(cdims)
    for l in range(n - 1):
        cin, c1 = cdims[l], cdims[l + 1]
        if l + 2 < n:                            # apply + fused next-layer stats pass
            c2 = cdims[l + 2]
            fixed = 4.0 * (cin * c1 + c1 * c2) + 16.0 * c2 + 16.0 * c1
            per_row = 4.0 * (cin + c1)           # 2B bf16 x 2 buffers x (x + h)
        else:                                    # final apply + max-over-K pass
            fixed = 4.0 * cin * c1 + 16.0 * c1
            per_row = 4.0 * cin + 8.0 * c1 / k   # f32 per-group output block
        rows.append(max(0.0, budget - fixed) / per_row)

    vmem_rows = max(base, (int(min(rows)) // base) * base)
    target = max(base, (2048 // base) * base)                  # ~2K rows
    two_blocks = max(base, (-(-int(m) // (2 * base))) * base)  # >=2 blocks if possible
    # NOTE: for very large nsample (group_all with huge N) `base` itself may be big;
    # that case would want an additional K-tiling with a running max (not needed here).
    return int(min(target, vmem_rows, two_blocks))


def _bn_scale_shift(stats, gamma_p, beta_p, m_real, eps):
    """Fold BN(batch stats) into y*scale + shift.  stats: [n_outer, 2, Cp] partials
    holding per-channel [sum, sum(y^2)]."""
    tot = jnp.sum(stats.astype(jnp.float32), axis=0)         # (2, Cp)
    mean = tot[0] / m_real
    var = jnp.maximum(tot[1] / m_real - mean * mean, 0.0)    # guard f32 cancellation
    scale = gamma_p * lax.rsqrt(var + eps)
    shift = beta_p - mean * scale
    return scale[None, :], shift[None, :]                    # (1, Cp) f32 each


def _bn_from_gram(colsum, gram, w, gamma_p, beta_p, m_real, eps):
    """Fold BN(batch stats) of y = x @ w from colsum(x) and the Gram matrix x^T x:
    mean = (1^T x) w / M, E[y^2] = diag(w^T (x^T x) w) / M."""
    mean = (colsum @ w) / m_real
    ey2 = jnp.sum(w * (gram @ w), axis=0) / m_real
    var = jnp.maximum(ey2 - mean * mean, 0.0)
    scale = gamma_p * lax.rsqrt(var + eps)
    shift = beta_p - mean * scale
    return scale[None, :], shift[None, :]                    # (1, Cp) f32 each


# ----------------------------------------------------------------------------
# Pallas kernels
# ----------------------------------------------------------------------------
def _apply_stats_kernel(row_cap, tmk, has_pad, x_ref, w_ref, scale_ref, shift_ref,
                        wn_ref, h_ref, stats_ref):
    """Apply the current layer (matmul + folded BN scale/shift + ReLU), write the
    bf16 activation block, and accumulate the NEXT layer's per-channel
    [sum, sum(y^2)] statistics in a resident f32 accumulator."""
    n_inner = pl.num_programs(1)

    @pl.when(pl.program_id(1) == 0)
    def _():
        stats_ref[...] = jnp.zeros_like(stats_ref)

    y = jnp.dot(x_ref[...], w_ref[...], preferred_element_type=jnp.float32)
    h = jnp.maximum(y * scale_ref[...] + shift_ref[...], 0.0)
    h_bf = h.astype(jnp.bfloat16)
    # Padded rows may hold garbage (relu(shift)); they only ever feed padded groups
    # in the final max pass (asserted group-aligned) and are masked out of every
    # statistics accumulation below, so the unmasked store is safe.
    h_ref[...] = h_bf

    y2 = jnp.dot(h_bf, wn_ref[...], preferred_element_type=jnp.float32)

    def accum(v):
        stats_ref[...] += jnp.concatenate(
            [jnp.sum(v, axis=0, keepdims=True),
             jnp.sum(v * v, axis=0, keepdims=True)], axis=0)[None]

    if not has_pad:
        # m_pad == M: mask-free variant (no iota / compare / select at all).
        accum(y2)
    else:
        blk = pl.program_id(0) * n_inner + pl.program_id(1)
        is_partial = (blk + 1) * tmk > row_cap       # block contains padded rows

        @pl.when(jnp.logical_not(is_partial))
        def _():
            accum(y2)

        @pl.when(is_partial)
        def _():
            rid = blk * tmk + lax.broadcasted_iota(jnp.int32, (tmk, 1), 0)
            accum(jnp.where(rid < row_cap, y2, 0.0))


def _apply_max_kernel(k, x_ref, w_ref, scale_ref, shift_ref, out_ref):
    """Final pass: h = relu(x@w * scale + shift); max over the nsample axis."""
    y = jnp.dot(x_ref[...], w_ref[...], preferred_element_type=jnp.float32)
    h = jnp.maximum(y * scale_ref[...] + shift_ref[...], 0.0)
    tg, c = out_ref.shape
    out_ref[...] = jnp.max(h.reshape(tg, k, c), axis=1)


# ----------------------------------------------------------------------------
# pallas_call wrappers (one per pass)
# ----------------------------------------------------------------------------
def _apply_stats_pass(x, w, scale, shift, w_next, tmk, n_outer, n_inner, m_real,
                      vmem_limit):
    m_pad, cin = x.shape
    c1 = w.shape[1]
    c2 = w_next.shape[1]
    kernel = functools.partial(_apply_stats_kernel, m_real, tmk, m_pad > m_real)
    return pl.pallas_call(
        kernel,
        out_shape=(jax.ShapeDtypeStruct((m_pad, c1), jnp.bfloat16),
                   jax.ShapeDtypeStruct((n_outer, 2, c2), jnp.float32)),
        grid_spec=pltpu.PrefetchScalarGridSpec(
            num_scalar_prefetch=0,
            grid=(n_outer, n_inner),
            in_specs=[
                pl.BlockSpec((tmk, cin), lambda o, i: (o * n_inner + i, 0)),
                pl.BlockSpec((cin, c1), lambda o, i: (0, 0)),
                pl.BlockSpec((1, c1), lambda o, i: (0, 0)),
                pl.BlockSpec((1, c1), lambda o, i: (0, 0)),
                pl.BlockSpec((c1, c2), lambda o, i: (0, 0)),
            ],
            out_specs=(
                pl.BlockSpec((tmk, c1), lambda o, i: (o * n_inner + i, 0)),
                pl.BlockSpec((1, 2, c2), lambda o, i: (o, 0, 0)),
            ),
        ),
        compiler_params=pltpu.CompilerParams(
            dimension_semantics=("parallel", "arbitrary"),
            vmem_limit_bytes=vmem_limit),
        cost_estimate=pl.CostEstimate(
            flops=int(2 * m_pad * (cin * c1 + c1 * c2)),
            transcendentals=0,
            bytes_accessed=int(2 * m_pad * (cin + c1) + 2 * (cin * c1 + c1 * c2)
                               + 8 * n_outer * c2)),
    )(x, w, scale, shift, w_next)


def _apply_max_pass(x, w, scale, shift, tmk, k, n_blocks, vmem_limit):
    m_pad, cin = x.shape
    cout = w.shape[1]
    tg = tmk // k
    g_pad = m_pad // k
    kernel = functools.partial(_apply_max_kernel, k)
    return pl.pallas_call(
        kernel,
        out_shape=jax.ShapeDtypeStruct((g_pad, cout), jnp.float32),
        grid_spec=pltpu.PrefetchScalarGridSpec(
            num_scalar_prefetch=0,
            grid=(n_blocks,),
            in_specs=[
                pl.BlockSpec((tmk, cin), lambda b: (b, 0)),
                pl.BlockSpec((cin, cout), lambda b: (0, 0)),
                pl.BlockSpec((1, cout), lambda b: (0, 0)),
                pl.BlockSpec((1, cout), lambda b: (0, 0)),
            ],
            out_specs=pl.BlockSpec((tg, cout), lambda b: (b, 0)),
        ),
        compiler_params=pltpu.CompilerParams(
            dimension_semantics=("parallel",),
            vmem_limit_bytes=vmem_limit),
        cost_estimate=pl.CostEstimate(
            flops=int(2 * m_pad * cin * cout),
            transcendentals=0,
            bytes_accessed=int(2 * m_pad * cin + 2 * cin * cout + 4 * g_pad * cout)),
    )(x, w, scale, shift)


# ----------------------------------------------------------------------------
# MLP (conv1x1 -> BN -> ReLU)*L + max over nsample, fully tiled
# ----------------------------------------------------------------------------
def pointnet_sa_mlp(new_points, params, eps=1e-5):
    """new_points: [B, S, K, Cin] channels-last.  Returns [B, C_last, S] (f32)."""
    B, S, K, Cin = new_points.shape
    L = len(params)
    c_last = params[-1][0].shape[0]

    vmem_limit, n_cores = _tpu_params()

    # Repack / pad parameters.  NOTE: conv bias is dropped on purpose — it cancels
    # exactly in (y - mean) under training-mode BatchNorm.
    cin_p = _round_up(max(Cin, 8), 8)
    wps, gps, bps, cdims = [], [], [], [cin_p]
    last = cin_p
    for (w, _b, g, be) in params:
        cout_p = _round_up(w.shape[0], 128)               # lane-dense channels
        wt = _pad_to(jnp.transpose(w).astype(jnp.float32), (last, cout_p))
        wps.append(wt.astype(jnp.bfloat16))
        gps.append(_pad_to(g.astype(jnp.float32), (cout_p,)))
        bps.append(_pad_to(be.astype(jnp.float32), (cout_p,)))
        cdims.append(cout_p)
        last = cout_p

    M = B * S * K
    tmk = _choose_row_block(M, K, cdims, vmem_limit)
    n_blocks = -(-M // tmk)
    n_outer = n_cores if (n_blocks >= 2 and n_cores >= 2) else 1
    n_blocks = _round_up(n_blocks, n_outer)
    n_inner = n_blocks // n_outer
    m_pad = n_blocks * tmk
    # Padded rows must form whole K-sized groups so the final max pass never mixes
    # padded rows into real groups (they are sliced away afterwards).
    assert (m_pad - M) % K == 0, "row padding must be group (nsample) aligned"

    # Pad + cast straight to bf16 in one fused XLA expression (no f32 intermediate
    # materialization of the flattened/padded activations).
    x = _pad_to(new_points.reshape(M, Cin), (m_pad, cin_p)).astype(jnp.bfloat16)

    # Layer-0 BN statistics via the Gram trick on x itself (colsum + x^T x), so the
    # previous dedicated Pallas stats pass (an extra full HBM read of x + a grid
    # launch) is eliminated.  Uses the bf16-rounded weights so the folded scale /
    # shift match what the apply kernel actually computes.
    colsum = jnp.sum(x.astype(jnp.float32), axis=0)                    # (cin_p,)
    gram = lax.dot_general(x, x, (((0,), (0,)), ((), ())),
                           preferred_element_type=jnp.float32)         # (cin_p, cin_p)
    scale, shift = _bn_from_gram(colsum, gram, wps[0].astype(jnp.float32),
                                 gps[0], bps[0], M, eps)

    # Layers 1..L-1: apply previous layer (bf16 activation to HBM, written once)
    # fused with the next layer's stats accumulation (read once).
    h = x
    for l in range(1, L):
        h, stats = _apply_stats_pass(h, wps[l - 1], scale, shift, wps[l],
                                     tmk, n_outer, n_inner, M, vmem_limit)
        scale, shift = _bn_scale_shift(stats, gps[l], bps[l], M, eps)

    # Last layer: apply + max over the nsample axis (group-aligned blocks).
    out = _apply_max_pass(h, wps[L - 1], scale, shift, tmk, K, n_blocks, vmem_limit)
    out = out[: B * S, :c_last]                           # drop padded rows/channels
    return jnp.transpose(out.reshape(B, S, c_last), (0, 2, 1))  # [B, C_last, S]


# ----------------------------------------------------------------------------
# Plain-JAX glue reproducing the grouping logic of the PyTorch module
# ----------------------------------------------------------------------------
def index_points(points, idx):
    # points [B, N, C], idx [B, ...] int -> [B, ..., C]
    return jax.vmap(lambda p, i: p[i])(points, idx)


def square_distance(src, dst):
    def sqd(a, b):
        d = -2.0 * jnp.einsum("bnc,bmc->bnm", a, b)
        d = d + jnp.sum(a ** 2, -1)[:, :, None]
        d = d + jnp.sum(b ** 2, -1)[:, None, :]
        return d

    dist_xy = sqd(src[:, :, :2], dst[:, :, :2])
    dist_t = sqd(src[:, :, 2:3], dst[:, :, 2:3])
    dist_ori = sqd(src[:, :, :3], dst[:, :, :3])
    dist = 1.0 / (jnp.sqrt(2.0 * dist_t + 1e-6) + 1e-6) + 1.0 / (
        jnp.sqrt(dist_xy + 1e-6) + 1e-6
    )
    return dist_t, dist_xy, dist, dist_ori


def query_ball_point(radius, nsample, xyz, new_xyz, t_list, i=0):
    B, N, _ = xyz.shape
    _, S, _ = new_xyz.shape
    dists = t_list[:, 1:7] - t_list[:, 0:6]          # [B, 6]
    t = dists[:, :5] + dists[:, 1:6]                 # [B, 5]
    max_t_sorted = -jnp.sort(-t, axis=-1)            # descending sort
    max_t = (max_t_sorted[:, i] ** 2)[:, None, None]

    group_idx = jnp.broadcast_to(
        jnp.arange(N, dtype=jnp.int32)[None, None, :], (B, S, N)
    )
    dist_t, dist_xy, _, dist_ori = square_distance(new_xyz, xyz)
    group_idx = jnp.where(dist_xy > radius, N, group_idx)
    group_idx = jnp.where(dist_t > max_t, N, group_idx)
    group_idx = jnp.sort(group_idx, axis=-1)[:, :, :nsample]

    group_idx_ori = jnp.argsort(dist_ori, axis=-1)
    group_first = jnp.broadcast_to(group_idx_ori[:, :, 0:1], (B, S, nsample))
    mask = group_idx == N
    group_idx = jnp.where(mask, group_first, group_idx).astype(jnp.int32)
    return group_idx


def pointnet_set_abstraction_forward(
    xyz, points, mask, t_list, params, radius, nsample, group_all
):
    """xyz [B,N,3], points [B,N,D] or None, mask (query pts) [B,S,3], t_list [B,7]."""
    if group_all:
        B, N, C = xyz.shape
        new_xyz = jnp.zeros((B, 1, C), xyz.dtype)
        grouped_xyz = xyz.reshape(B, 1, N, C)
        if points is not None:
            new_points = jnp.concatenate(
                [grouped_xyz, points.reshape(B, 1, N, -1)], axis=-1
            )
        else:
            new_points = grouped_xyz
    else:
        new_xyz = mask
        idx = query_ball_point(radius, nsample, xyz, new_xyz, t_list)
        grouped_xyz = index_points(xyz, idx)                      # [B,S,K,3]
        grouped_xyz_norm = grouped_xyz - new_xyz[:, :, None, :]
        if points is not None:
            grouped_points = index_points(points, idx)            # [B,S,K,D]
            new_points = jnp.concatenate(
                [grouped_xyz_norm, grouped_points], axis=-1
            )
        else:
            new_points = grouped_xyz_norm

    new_feats = pointnet_sa_mlp(new_points, params)               # [B, C', S]
    new_xyz_out = jnp.transpose(new_xyz, (0, 2, 1))               # [B, 3, S]
    return new_xyz_out, new_feats


# ----------------------------------------------------------------------------
# Deterministic parameter init (Conv2d 1x1 + BatchNorm2d shapes from __init__)
# ----------------------------------------------------------------------------
def init_params(key, in_channel, mlp):
    params = []
    last = in_channel
    for out_ch in mlp:
        key, k1, k2 = jax.random.split(key, 3)
        bound = 1.0 / np.sqrt(last)
        w = jax.random.uniform(k1, (out_ch, last), jnp.float32, -bound, bound)
        b = jax.random.uniform(k2, (out_ch,), jnp.float32, -bound, bound)
        gamma = jnp.linspace(0.9, 1.1, out_ch, dtype=jnp.float32)
        beta = jnp.linspace(-0.05, 0.05, out_ch, dtype=jnp.float32)
        params.append((w, b, gamma, beta))
        last = out_ch
    return params


# Pure-JAX f32 reference mirroring PyTorch NCHW semantics (for a sanity check).
def reference_mlp_max(new_points, params, eps=1e-5):
    h = jnp.transpose(new_points, (0, 3, 2, 1))  # [B, C, K, S]
    for (w, b, g, be) in params:
        y = jnp.einsum("oc,bcks->boks", w, h) + b[None, :, None, None]
        mean = jnp.mean(y, axis=(0, 2, 3), keepdims=True)
        var = jnp.mean((y - mean) ** 2, axis=(0, 2, 3), keepdims=True)
        y = g[None, :, None, None] * (y - mean) / jnp.sqrt(var + eps) + be[
            None, :, None, None
        ]
        h = jnp.maximum(y, 0.0)
    return jnp.max(h, axis=2)  # [B, C', S]


def _run_and_check(key, B, N, S, K, D, mlp, radius):
    k1, k2, k3, k4, kp = jax.random.split(key, 5)
    xyz = jax.random.uniform(k1, (B, N, 3), jnp.float32)
    points = jax.random.normal(k2, (B, N, D), jnp.float32)
    new_xyz = jax.random.uniform(k3, (B, S, 3), jnp.float32)
    t_list = jnp.cumsum(
        jax.random.uniform(k4, (B, 7), jnp.float32, 0.05, 0.3), axis=1
    )
    params = init_params(kp, 3 + D, mlp)

    out_xyz, out_feats = pointnet_set_abstraction_forward(
        xyz, points, new_xyz, t_list, params, radius, K, group_all=False
    )
    jax.block_until_ready((out_xyz, out_feats))

    # sanity check vs a pure-JAX f32 NCHW reference (kernel uses bf16 MXU operands,
    # hence the slightly loosened tolerance).
    idx = query_ball_point(radius, K, xyz, new_xyz, t_list)
    grouped_xyz = index_points(xyz, idx)
    grouped = jnp.concatenate(
        [grouped_xyz - new_xyz[:, :, None, :], index_points(points, idx)], axis=-1
    )
    ref = reference_mlp_max(grouped, params)
    assert out_xyz.shape == (B, 3, S)
    assert out_feats.shape == (B, mlp[-1], S)
    assert np.allclose(np.asarray(out_feats), np.asarray(ref), rtol=3e-2, atol=3e-2)


if __name__ == "__main__":
    key = jax.random.PRNGKey(0)
    k_a, k_b = jax.random.split(key)
    # Small config (m_pad == M -> mask-free kernel variant, 2 row blocks).
    _run_and_check(k_a, B=2, N=16, S=8, K=8, D=4, mlp=[16, 32], radius=0.4)
    # Larger config: 3 MLP layers, multiple inner (accumulation) steps per core,
    # padded rows -> exercises the stats accumulator and the gated masking path.
    _run_and_check(k_b, B=4, N=64, S=33, K=32, D=5, mlp=[32, 64, 96], radius=0.4)
    print("KERNEL_OK")
</pallas_src>

<mosaic_0001>
module attributes {stable_mosaic.version = 11 : i64} {
  func.func @_apply_stats_kernel(%arg0: i32, %arg1: i32, %arg2: memref<64x8xbf16, #tpu.memory_space<vmem>>, %arg3: memref<8x128xbf16, #tpu.memory_space<vmem>>, %arg4: memref<1x128xf32, #tpu.memory_space<vmem>>, %arg5: memref<1x128xf32, #tpu.memory_space<vmem>>, %arg6: memref<128x128xbf16, #tpu.memory_space<vmem>>, %arg7: memref<64x128xbf16, #tpu.memory_space<vmem>>, %arg8: memref<1x2x128xf32, #tpu.memory_space<vmem>>) attributes {dimension_semantics = [#tpu.dimension_semantics<parallel>, #tpu.dimension_semantics<arbitrary>], iteration_bounds = array<i64: 1, 2>, scalar_prefetch = 0 : i64, scratch_operands = 0 : i64, tpu.core_type = #tpu.core_type<tc>, window_params = [{transform_indices = @transform_0, window_bounds = array<i64: 64, 8>}, {pipeline_mode = #tpu.pipeline_mode<synchronous>, transform_indices = @transform_1, window_bounds = array<i64: 8, 128>}, {pipeline_mode = #tpu.pipeline_mode<synchronous>, transform_indices = @transform_2, window_bounds = array<i64: 1, 128>}, {pipeline_mode = #tpu.pipeline_mode<synchronous>, transform_indices = @transform_3, window_bounds = array<i64: 1, 128>}, {pipeline_mode = #tpu.pipeline_mode<synchronous>, transform_indices = @transform_4, window_bounds = array<i64: 128, 128>}, {transform_indices = @transform_5, window_bounds = array<i64: 64, 128>}, {transform_indices = @transform_6, window_bounds = array<i64: 1, 2, 128>}]} {
    %c0_i32 = arith.constant 0 : i32
    %0 = arith.cmpi eq, %arg1, %c0_i32 : i32
    %1 = arith.extui %0 : i1 to i32
    %c0_i32_0 = arith.constant 0 : i32
    %2 = arith.cmpi ne, %1, %c0_i32_0 : i32
    scf.if %2 {
      %cst_22 = arith.constant 0.000000e+00 : f32
      %28 = vector.broadcast %cst_22 : f32 to vector<1x2x128xf32>
      %c0_23 = arith.constant 0 : index
      %c0_24 = arith.constant 0 : index
      %c0_25 = arith.constant 0 : index
      %29 = vector.load %arg8[%c0_23, %c0_24, %c0_25] : memref<1x2x128xf32, #tpu.memory_space<vmem>>, vector<1x2x128xf32>
      tpu.vector_store %arg8[%c0_23, %c0_24, %c0_25], %28 {strides = array<i32>} : memref<1x2x128xf32, #tpu.memory_space<vmem>>, vector<1x2x128xf32>,
    } else {
    }
    %c0 = arith.constant 0 : index
    %c0_1 = arith.constant 0 : index
    %3 = vector.load %arg2[%c0, %c0_1] : memref<64x8xbf16, #tpu.memory_space<vmem>>, vector<64x8xbf16>
    %c0_2 = arith.constant 0 : index
    %c0_3 = arith.constant 0 : index
    %4 = vector.load %arg3[%c0_2, %c0_3] : memref<8x128xbf16, #tpu.memory_space<vmem>>, vector<8x128xbf16>
    %cst = arith.constant dense<0.000000e+00> : vector<64x128xf32>
    %5 = tpu.matmul %3, %4, %cst {dimension_numbers = #tpu.dot_dimension_numbers<[1], [0], [0], [1], [0, 0, 1, 1], [], []>} : vector<64x8xbf16>, vector<8x128xbf16>, vector<64x128xf32> -> vector<64x128xf32>
    %c0_4 = arith.constant 0 : index
    %c0_5 = arith.constant 0 : index
    %6 = vector.load %arg4[%c0_4, %c0_5] : memref<1x128xf32, #tpu.memory_space<vmem>>, vector<1x128xf32>
    %7 = vector.broadcast %6 : vector<1x128xf32> to vector<64x128xf32>
    %8 = arith.mulf %5, %7 : vector<64x128xf32>
    %c0_6 = arith.constant 0 : index
    %c0_7 = arith.constant 0 : index
    %9 = vector.load %arg5[%c0_6, %c0_7] : memref<1x128xf32, #tpu.memory_space<vmem>>, vector<1x128xf32>
    %10 = vector.broadcast %9 : vector<1x128xf32> to vector<64x128xf32>
    %11 = arith.addf %8, %10 : vector<64x128xf32>
    %cst_8 = arith.constant 0.000000e+00 : f32
    %12 = vector.broadcast %cst_8 : f32 to vector<64x128xf32>
    %13 = arith.maximumf %11, %12 : vector<64x128xf32>
    %14 = arith.truncf %13 : vector<64x128xf32> to vector<64x128xbf16>
    %c0_9 = arith.constant 0 : index
    %c0_10 = arith.constant 0 : index
    %15 = vector.load %arg7[%c0_9, %c0_10] : memref<64x128xbf16, #tpu.memory_space<vmem>>, vector<64x128xbf16>
    tpu.vector_store %arg7[%c0_9, %c0_10], %14 {strides = array<i32>} : memref<64x128xbf16, #tpu.memory_space<vmem>>, vector<64x128xbf16>,
    %c0_11 = arith.constant 0 : index
    %c0_12 = arith.constant 0 : index
    %16 = vector.load %arg6[%c0_11, %c0_12] : memref<128x128xbf16, #tpu.memory_space<vmem>>, vector<128x128xbf16>
    %cst_13 = arith.constant dense<0.000000e+00> : vector<64x128xf32>
    %17 = tpu.matmul %14, %16, %cst_13 {dimension_numbers = #tpu.dot_dimension_numbers<[1], [0], [0], [1], [0, 0, 1, 1], [], []>} : vector<64x128xbf16>, vector<128x128xbf16>, vector<64x128xf32> -> vector<64x128xf32>
    %c0_14 = arith.constant 0 : index
    %c0_15 = arith.constant 0 : index
    %c0_16 = arith.constant 0 : index
    %18 = vector.load %arg8[%c0_14, %c0_15, %c0_16] : memref<1x2x128xf32, #tpu.memory_space<vmem>>, vector<1x2x128xf32>
    %cst_17 = arith.constant dense<0.000000e+00> : vector<128xf32>
    %19 = vector.multi_reduction <add>, %17, %cst_17 [0] : vector<64x128xf32> to vector<128xf32>
    %20 = vector.shape_cast %19 : vector<128xf32> to vector<1x128xf32>
    %21 = arith.mulf %17, %17 : vector<64x128xf32>
    %cst_18 = arith.constant dense<0.000000e+00> : vector<128xf32>
    %22 = vector.multi_reduction <add>, %21, %cst_18 [0] : vector<64x128xf32> to vector<128xf32>
    %23 = vector.shape_cast %22 : vector<128xf32> to vector<1x128xf32>
    %24 = tpu.concatenate %20, %23 in 0 : vector<1x128xf32>, vector<1x128xf32> -> vector<2x128xf32>
    %25 = vector.shape_cast %24 : vector<2x128xf32> to vector<1x2x128xf32>
    %26 = arith.addf %18, %25 : vector<1x2x128xf32>
    %c0_19 = arith.constant 0 : index
    %c0_20 = arith.constant 0 : index
    %c0_21 = arith.constant 0 : index
    %27 = vector.load %arg8[%c0_19, %c0_20, %c0_21] : memref<1x2x128xf32, #tpu.memory_space<vmem>>, vector<1x2x128xf32>
    tpu.vector_store %arg8[%c0_19, %c0_20, %c0_21], %26 {strides = array<i32>} : memref<1x2x128xf32, #tpu.memory_space<vmem>>, vector<1x2x128xf32>,
    return
  }
  func.func @transform_0(%arg0: i32, %arg1: i32) -> (i32, i32) {
    %c2_i32 = arith.constant 2 : i32
    %0 = arith.muli %arg0, %c2_i32 : i32
    %1 = arith.addi %0, %arg1 : i32
    %c0_i32 = arith.constant 0 : i32
    %c0_i32_0 = arith.constant 0 : i32
    return %1, %c0_i32 : i32, i32
  }
  func.func @transform_1(%arg0: i32, %arg1: i32) -> (i32, i32) {
    %c0_i32 = arith.constant 0 : i32
    %c0_i32_0 = arith.constant 0 : i32
    %c0_i32_1 = arith.constant 0 : i32
    return %c0_i32, %c0_i32_0 : i32, i32
  }
  func.func @transform_2(%arg0: i32, %arg1: i32) -> (i32, i32) {
    %c0_i32 = arith.constant 0 : i32
    %c0_i32_0 = arith.constant 0 : i32
    %c0_i32_1 = arith.constant 0 : i32
    return %c0_i32, %c0_i32_0 : i32, i32
  }
  func.func @transform_3(%arg0: i32, %arg1: i32) -> (i32, i32) {
    %c0_i32 = arith.constant 0 : i32
    %c0_i32_0 = arith.constant 0 : i32
    %c0_i32_1 = arith.constant 0 : i32
    return %c0_i32, %c0_i32_0 : i32, i32
  }
  func.func @transform_4(%arg0: i32, %arg1: i32) -> (i32, i32) {
    %c0_i32 = arith.constant 0 : i32
    %c0_i32_0 = arith.constant 0 : i32
    %c0_i32_1 = arith.constant 0 : i32
    return %c0_i32, %c0_i32_0 : i32, i32
  }
  func.func @transform_5(%arg0: i32, %arg1: i32) -> (i32, i32) {
    %c2_i32 = arith.constant 2 : i32
    %0 = arith.muli %arg0, %c2_i32 : i32
    %1 = arith.addi %0, %arg1 : i32
    %c0_i32 = arith.constant 0 : i32
    %c0_i32_0 = arith.constant 0 : i32
    return %1, %c0_i32 : i32, i32
  }
  func.func @transform_6(%arg0: i32, %arg1: i32) -> (i32, i32, i32) {
    %c0_i32 = arith.constant 0 : i32
    %c0_i32_0 = arith.constant 0 : i32
    %c0_i32_1 = arith.constant 0 : i32
    return %arg0, %c0_i32, %c0_i32_0 : i32, i32, i32
  }
}

</mosaic_0001>

<llo_original>
// kernel: tpu_custom_call.1
$region0: #{tpu_custom_call.1}
  #allocation0 [shape = 'u32[]', space=smem, size = 0x4, offset = 0x4, fixed_abs, tag = 'smem constant byte address 0x4 - core index']
  #allocation1 [shape = 'u32[144,128]{1,0:T(1,128)}', space=vmem, size = 0x12000, scoped, tag = 'internal scratch']
  %s0 = inlined_call_operand.hbm [shape: bf16[128,8], index: 0, kind: input, shape index: {}]
  %s1 = inlined_call_operand.hbm [shape: bf16[8,128], index: 1, kind: input, shape index: {}]
  %s2 = inlined_call_operand.hbm [shape: f32[1,128], index: 2, kind: input, shape index: {}]
  %s3 = inlined_call_operand.hbm [shape: f32[1,128], index: 3, kind: input, shape index: {}]
  %s4 = inlined_call_operand.hbm [shape: bf16[128,128], index: 4, kind: input, shape index: {}]
  %s5 = inlined_call_operand.hbm [shape: bf16[128,128], index: 5, kind: output, shape index: {0}]
  %s6 = inlined_call_operand.hbm [shape: f32[1,2,128], index: 6, kind: output, shape index: {1}]
  %7 = xla_tuple %s5, %s6
  %s8 = sld [smem:[#allocation0]]
  $region85: #{tpu_custom_call.1} parent=0
    _
  %s10 = ssub.s32 1, %s8
  %s11 = scalar_select 0, %s10, %s8
  $region1: #{tpu_custom_call.1} parent=0
    #allocation2 [shape = 'u8[32768]{0}', space=vmem, size = 0x8000, scoped, tag = 'input window, operand 0']
    #allocation3 [shape = 's32[2]{0}', space=sflag, size = 0x8, scoped, tag = 'scoped memory for tpu_custom_call.1']
    #allocation4 [shape = 's32[2]{0}', space=sflag, size = 0x8, scoped, tag = 'scoped memory for tpu_custom_call.1']
    #allocation5 [shape = 'u8[2048]{0}', space=vmem, size = 0x800, scoped, tag = 'input window, operand 1, single buffered']
    #allocation6 [shape = 's32[1]{0}', space=sflag, size = 0x4, scoped, tag = 'scoped memory for tpu_custom_call.1']
    #allocation7 [shape = 'u8[512]{0}', space=vmem, size = 0x400, scoped, tag = 'input window, operand 2, single buffered']
    #allocation8 [shape = 'u8[512]{0}', space=vmem, size = 0x400, scoped, tag = 'input window, operand 3, single buffered']
    #allocation9 [shape = 's32[1]{0}', space=sflag, size = 0x4, scoped, tag = 'scoped memory for tpu_custom_call.1']
    #allocation10 [shape = 'u8[32768]{0}', space=vmem, size = 0x8000, scoped, tag = 'input window, operand 4, single buffered']
    #allocation11 [shape = 'u8[32768]{0}', space=vmem, size = 0x8000, scoped, tag = 'output window, operand 0']
    #allocation12 [shape = 'u8[1024]{0}', space=vmem, size = 0x400, scoped, tag = 'output window, operand 1, single buffered']
    #allocation13 [shape = 's32[1]{0}', space=sflag, size = 0x4, scoped, tag = 'scoped memory for tpu_custom_call.1']
    %12 = vsyncpa [#allocation3], 0
    %s13 = scalar_lea.sflag [#allocation3], 1
    %14 = vsyncpa %s13, 0
    %15 = vsyncpa [#allocation6], 0
    %16 = vsyncpa [#allocation9], 0
    %17 = vsyncpa [#allocation4], 0
    %s18 = scalar_lea.sflag [#allocation4], 1
    %19 = vsyncpa %s18, 0
    %20 = vsyncpa [#allocation13], 0
    loop: start=0, step=1, limit=4
    $region2: #{tpu_custom_call.1} parent=1 // loop_pre_header
      _
    $region3: #{tpu_custom_call.1} parent=1 // loop_header
      %s22 = sphi 0, %s26
      %p23 = scmp.ge.s32.totalorder %s22, 4
      %s29 = sphi 0, %s41
      %s30 = sphi 0, %s37
      %s31 = sphi 0, %s29
      %s32 = sphi 0, %s30
      %s33 = sphi 0, %s31
      %s34 = sphi 0, %s32
      %s48 = sphi 0, %s50
      %s51 = sphi 0, %s48
      %s52 = sphi 0, %s51
      %s68 = sphi 0, %s52
      %s72 = sphi 0, %s72
      %s74 = sphi 0, %s72
      %s75 = sphi 0, %s74
      %s89 = sphi 0, %s75
      %s93 = sphi 0, %s93
      %s95 = sphi 0, %s93
      %s96 = sphi 0, %s95
      %s110 = sphi 0, %s96
      %s114 = sphi 0, %s114
      %s116 = sphi 0, %s114
      %s117 = sphi 0, %s116
      %s131 = sphi 0, %s117
      %s135 = sphi 0, %s135
      %s137 = sphi 0, %s135
      %s138 = sphi 0, %s137
      %s152 = sphi 0, %s138
      %s162 = sphi 0, %s164
      %s165 = sphi 0, %s162
      %s166 = sphi 0, %s165
      %s182 = sphi 0, %s166
      %s188 = sphi 0, %s190
      %s191 = sphi 0, %s188
      %s192 = sphi 0, %s191
      %s208 = sphi 0, %s192
    $region4: #{tpu_custom_call.1} parent=1 // loop_header_branch
      %25 = sbr.rel (%p23) target = $region8
    $region5: #{tpu_custom_call.1} parent=1 // loop_body
      %s27 = ssub.s32 %s22, 1
      %s28 = ssub.s32 %s22, 2
      %s35 = sadd.s32 1, %s30
      %p36 = scmp.ge.s32.totalorder %s35, 2
      %s37 = scalar_select %p36, 0, %s35
      %s38 = sadd.s32 1, %s29
      %s39 = scalar_select %p36, %s38, %s29
      %p40 = scmp.ge.s32.totalorder %s39, 1
      %s41 = scalar_select %p40, 0, %s39
      %s42 = smul.u32 %s29, 2
      %s43 = sadd.s32 %s42, %s30
      %s44 = smul.u32 %s41, 2
      %s45 = sadd.s32 %s44, %s37
      %s46 = ssub.s32 %s43, %s45
      %p47 = scmp.eq.s32.totalorder %s46, 0
      %s49 = sadd.s32 %s48, 1
      %s50 = scalar_select %p47, %s48, %s49
      %p53 = pneg %p47
      %p54 = scmp.eq.s32.totalorder %s22, 1
      %p55 = por %p53, %p54
      %p56 = scmp.ne.s32.totalorder %s48, %s51
      %p57 = scmp.eq.s32.totalorder %s22, 0
      %p58 = por %p56, %p57
      %p59 = scmp.ne.s32.totalorder %s48, %s51
      %p60 = scmp.eq.s32.totalorder %s27, 1
      %p61 = por %p59, %p60
      %p62 = scmp.ne.s32.totalorder %s51, %s52
      %p63 = scmp.eq.s32.totalorder %s27, 0
      %p64 = por %p62, %p63
      %p65 = scmp.ne.s32.totalorder %s51, %s52
      %p66 = scmp.eq.s32.totalorder %s28, 1
      %p67 = por %p65, %p66
      %p69 = scmp.ne.s32.totalorder %s52, %s68
      %p70 = scmp.eq.s32.totalorder %s28, 0
      %p71 = por %p69, %p70
      %s73 = sadd.s32 %s72, 1
      %p76 = scmp.eq.s32.totalorder %s22, 1
      %p77 = scmp.ne.s32.totalorder %s72, %s74
      %p78 = scmp.eq.s32.totalorder %s22, 0
      %p79 = por %p77, %p78
      %p80 = scmp.ne.s32.totalorder %s72, %s74
      %p81 = scmp.eq.s32.totalorder %s27, 1
      %p82 = por %p80, %p81
      %p83 = scmp.ne.s32.totalorder %s74, %s75
      %p84 = scmp.eq.s32.totalorder %s27, 0
      %p85 = por %p83, %p84
      %p86 = scmp.ne.s32.totalorder %s74, %s75
      %p87 = scmp.eq.s32.totalorder %s28, 1
      %p88 = por %p86, %p87
      %p90 = scmp.ne.s32.totalorder %s75, %s89
      %p91 = scmp.eq.s32.totalorder %s28, 0
      %p92 = por %p90, %p91
      %s94 = sadd.s32 %s93, 1
      %p97 = scmp.eq.s32.totalorder %s22, 1
      %p98 = scmp.ne.s32.totalorder %s93, %s95
      %p99 = scmp.eq.s32.totalorder %s22, 0
      %p100 = por %p98, %p99
      %p101 = scmp.ne.s32.totalorder %s93, %s95
      %p102 = scmp.eq.s32.totalorder %s27, 1
      %p103 = por %p101, %p102
      %p104 = scmp.ne.s32.totalorder %s95, %s96
      %p105 = scmp.eq.s32.totalorder %s27, 0
      %p106 = por %p104, %p105
      %p107 = scmp.ne.s32.totalorder %s95, %s96
      %p108 = scmp.eq.s32.totalorder %s28, 1
      %p109 = por %p107, %p108
      %p111 = scmp.ne.s32.totalorder %s96, %s110
      %p112 = scmp.eq.s32.totalorder %s28, 0
      %p113 = por %p111, %p112
      %s115 = sadd.s32 %s114, 1
      %p118 = scmp.eq.s32.totalorder %s22, 1
      %p119 = scmp.ne.s32.totalorder %s114, %s116
      %p120 = scmp.eq.s32.totalorder %s22, 0
      %p121 = por %p119, %p120
      %p122 = scmp.ne.s32.totalorder %s114, %s116
      %p123 = scmp.eq.s32.totalorder %s27, 1
      %p124 = por %p122, %p123
      %p125 = scmp.ne.s32.totalorder %s116, %s117
      %p126 = scmp.eq.s32.totalorder %s27, 0
      %p127 = por %p125, %p126
      %p128 = scmp.ne.s32.totalorder %s116, %s117
      %p129 = scmp.eq.s32.totalorder %s28, 1
      %p130 = por %p128, %p129
      %p132 = scmp.ne.s32.totalorder %s117, %s131
      %p133 = scmp.eq.s32.totalorder %s28, 0
      %p134 = por %p132, %p133
      %s136 = sadd.s32 %s135, 1
      %p139 = scmp.eq.s32.totalorder %s22, 1
      %p140 = scmp.ne.s32.totalorder %s135, %s137
      %p141 = scmp.eq.s32.totalorder %s22, 0
      %p142 = por %p140, %p141
      %p143 = scmp.ne.s32.totalorder %s135, %s137
      %p144 = scmp.eq.s32.totalorder %s27, 1
      %p145 = por %p143, %p144
      %p146 = scmp.ne.s32.totalorder %s137, %s138
      %p147 = scmp.eq.s32.totalorder %s27, 0
      %p148 = por %p146, %p147
      %p149 = scmp.ne.s32.totalorder %s137, %s138
      %p150 = scmp.eq.s32.totalorder %s28, 1
      %p151 = por %p149, %p150
      %p153 = scmp.ne.s32.totalorder %s138, %s152
      %p154 = scmp.eq.s32.totalorder %s28, 0
      %p155 = por %p153, %p154
      %s156 = smul.u32 %s29, 2
      %s157 = sadd.s32 %s156, %s30
      %s158 = smul.u32 %s41, 2
      %s159 = sadd.s32 %s158, %s37
      %s160 = ssub.s32 %s157, %s159
      %p161 = scmp.eq.s32.totalorder %s160, 0
      %s163 = sadd.s32 %s162, 1
      %s164 = scalar_select %p161, %s162, %s163
      %p167 = pneg %p161
      %p168 = scmp.eq.s32.totalorder %s22, 1
      %p169 = por %p167, %p168
      %p170 = scmp.ne.s32.totalorder %s162, %s165
      %p171 = scmp.eq.s32.totalorder %s22, 0
      %p172 = por %p170, %p171
      %p173 = scmp.ne.s32.totalorder %s162, %s165
      %p174 = scmp.eq.s32.totalorder %s27, 1
      %p175 = por %p173, %p174
      %p176 = scmp.ne.s32.totalorder %s165, %s166
      %p177 = scmp.eq.s32.totalorder %s27, 0
      %p178 = por %p176, %p177
      %p179 = scmp.ne.s32.totalorder %s165, %s166
      %p180 = scmp.eq.s32.totalorder %s28, 1
      %p181 = por %p179, %p180
      %p183 = scmp.ne.s32.totalorder %s166, %s182
      %p184 = scmp.eq.s32.totalorder %s28, 0
      %p185 = por %p183, %p184
      %s186 = ssub.s32 %s29, %s41
      %p187 = scmp.eq.s32.totalorder %s186, 0
      %s189 = sadd.s32 %s188, 1
      %s190 = scalar_select %p187, %s188, %s189
      %p193 = pneg %p187
      %p194 = scmp.eq.s32.totalorder %s22, 1
      %p195 = por %p193, %p194
      %p196 = scmp.ne.s32.totalorder %s188, %s191
      %p197 = scmp.eq.s32.totalorder %s22, 0
      %p198 = por %p196, %p197
      %p199 = scmp.ne.s32.totalorder %s188, %s191
      %p200 = scmp.eq.s32.totalorder %s27, 1
      %p201 = por %p199, %p200
      %p202 = scmp.ne.s32.totalorder %s191, %s192
      %p203 = scmp.eq.s32.totalorder %s27, 0
      %p204 = por %p202, %p203
      %p205 = scmp.ne.s32.totalorder %s191, %s192
      %p206 = scmp.eq.s32.totalorder %s28, 1
      %p207 = por %p205, %p206
      %p209 = scmp.ne.s32.totalorder %s192, %s208
      %p210 = scmp.eq.s32.totalorder %s28, 0
      %p211 = por %p209, %p210
      %p212 = scmp.le.s32.totalorder 1, %s22
      %p213 = scmp.lt.s32.totalorder %s22, 3
      %p214 = pnand %p212, %p213
      %p215 = pneg %p214
      // Predicated region
      $region9: #{tpu_custom_call.1} parent=5 // pred_check
        _
      $region10: #{tpu_custom_call.1} parent=5 // pred_check_branch
        %217 = sbr.rel (%p214) target = $region12
      $region11: #{tpu_custom_call.1} parent=5 // pred_region
        %s218 = ssub.s32 %s22, 1
        // Predicated region
        $region13: #{tpu_custom_call.1} parent=11 // pred_check
          %p219 = pneg %p85
        $region14: #{tpu_custom_call.1} parent=11 // pred_check_branch
          %221 = sbr.rel (%p219) target = $region16
        $region15: #{tpu_custom_call.1} parent=11 // pred_region
          %s223 = ssub.s32 64, 64
          %224 = vsyncadd [#allocation6], %s223
          %s226 = sshll.u32 [#allocation5], 4
          %s227 = int_to_ptr.vmem [resolvable:$true] %s226
          %229 = dma.hbm_to_vmem [thread:$0]  %s1, 64, %s227, [#allocation6]
        $region16: #{tpu_custom_call.1} parent=11 // pred_fallthru
          _
        // Predicated region
        $region17: #{tpu_custom_call.1} parent=11 // pred_check
          %p230 = pneg %p106
        $region18: #{tpu_custom_call.1} parent=11 // pred_check_branch
          %232 = sbr.rel (%p230) target = $region20
        $region19: #{tpu_custom_call.1} parent=11 // pred_region
          %s234 = ssub.s32 16, 16
          %235 = vsyncadd [#allocation6], %s234
          %s237 = sshll.u32 [#allocation7], 4
          %s238 = int_to_ptr.vmem [resolvable:$true] %s237
          %240 = dma.hbm_to_vmem [thread:$0]  %s2, 16, %s238, [#allocation6]
        $region20: #{tpu_custom_call.1} parent=11 // pred_fallthru
          _
        // Predicated region
        $region21: #{tpu_custom_call.1} parent=11 // pred_check
          %p241 = pneg %p127
        $region22: #{tpu_custom_call.1} parent=11 // pred_check_branch
          %243 = sbr.rel (%p241) target = $region24
        $region23: #{tpu_custom_call.1} parent=11 // pred_region
          %s245 = ssub.s32 16, 16
          %246 = vsyncadd [#allocation9], %s245
          %s248 = sshll.u32 [#allocation8], 4
          %s249 = int_to_ptr.vmem [resolvable:$true] %s248
          %251 = dma.hbm_to_vmem [thread:$0]  %s3, 16, %s249, [#allocation9]
        $region24: #{tpu_custom_call.1} parent=11 // pred_fallthru
          _
        // Predicated region
        $region25: #{tpu_custom_call.1} parent=11 // pred_check
          %p252 = pneg %p148
        $region26: #{tpu_custom_call.1} parent=11 // pred_check_branch
          %254 = sbr.rel (%p252) target = $region28
        $region27: #{tpu_custom_call.1} parent=11 // pred_region
          %s256 = ssub.s32 1024, 1024
          %257 = vsyncadd [#allocation9], %s256
          %s258 = sshll.u32 [#allocation10], 4
          %s259 = int_to_ptr.vmem [resolvable:$true] %s258
          %264 = dma.hbm_to_vmem [thread:$0]  %s4, 1024, %s259, [#allocation9], 64, 64, 4
        $region28: #{tpu_custom_call.1} parent=11 // pred_fallthru
          _
      $region12: #{tpu_custom_call.1} parent=5 // pred_fallthru
        _
      %p265 = scmp.lt.s32.totalorder %s22, 2
      // Predicated region
      $region29: #{tpu_custom_call.1} parent=5 // pred_check
        %p266 = pneg %p265
      $region30: #{tpu_custom_call.1} parent=5 // pred_check_branch
        %268 = sbr.rel (%p266) target = $region32
      $region31: #{tpu_custom_call.1} parent=5 // pred_region
        // Predicated region
        $region33: #{tpu_custom_call.1} parent=31 // pred_check
          %p269 = pneg %p58
        $region34: #{tpu_custom_call.1} parent=31 // pred_check_branch
          %271 = sbr.rel (%p269) target = $region36
        $region35: #{tpu_custom_call.1} parent=31 // pred_region
          %s272 = sand.u32 %s48, 1
          %s273 = scalar_lea.sflag [#allocation3], %s272
          %s274 = sand.u32 %s48, 1
          %s275 = smul.addr %s274, 32
          %s276 = scalar_lea.vmem [#allocation2], %s275
          %s277 = smul.u32 %s29, 2
          %s278 = sadd.s32 %s277, %s30
          %s279 = smul.u32 8, %s278
          %s281 = ssub.s32 512, 512
          %282 = vsyncadd %s273, %s281
          %s283 = smul.addr %s279, 64
          %s284 = scalar_lea.hbm %s0, %s283
          %s285 = sshll.u32 %s276, 4
          %s286 = int_to_ptr.vmem [resolvable:$true] %s285
          %291 = dma.hbm_to_vmem [thread:$0]  %s284, 512, %s286, %s273, 64, 64, 4
        $region36: #{tpu_custom_call.1} parent=31 // pred_fallthru
          _
      $region32: #{tpu_custom_call.1} parent=5 // pred_fallthru
        _
      %p292 = scmp.le.s32.totalorder 1, %s22
      %p293 = scmp.lt.s32.totalorder %s22, 3
      %p294 = pnand %p292, %p293
      %p295 = pneg %p294
      // Predicated region
      $region37: #{tpu_custom_call.1} parent=5 // pred_check
        _
      $region38: #{tpu_custom_call.1} parent=5 // pred_check_branch
        %297 = sbr.rel (%p294) target = $region40
      $region39: #{tpu_custom_call.1} parent=5 // pred_region
        %s298 = ssub.s32 %s22, 1
        %s299 = sand.u32 %s51, 1
        %s300 = scalar_lea.sflag [#allocation3], %s299
        %s301 = sand.u32 %s51, 1
        %s302 = smul.addr %s301, 32
        %s303 = scalar_lea.vmem [#allocation2], %s302
        // Predicated region
        $region41: #{tpu_custom_call.1} parent=39 // pred_check
          %p304 = pneg %p64
        $region42: #{tpu_custom_call.1} parent=39 // pred_check_branch
          %306 = sbr.rel (%p304) target = $region44
        $region43: #{tpu_custom_call.1} parent=39 // pred_region
          %307 = dma.done %s300, 512
        $region44: #{tpu_custom_call.1} parent=39 // pred_fallthru
          _
        // Predicated region
        $region45: #{tpu_custom_call.1} parent=39 // pred_check
          %p308 = pneg %p85
        $region46: #{tpu_custom_call.1} parent=39 // pred_check_branch
          %310 = sbr.rel (%p308) target = $region48
        $region47: #{tpu_custom_call.1} parent=39 // pred_region
          %311 = dma.done [#allocation6], 64
        $region48: #{tpu_custom_call.1} parent=39 // pred_fallthru
          _
        // Predicated region
        $region49: #{tpu_custom_call.1} parent=39 // pred_check
          %p312 = pneg %p106
        $region50: #{tpu_custom_call.1} parent=39 // pred_check_branch
          %314 = sbr.rel (%p312) target = $region52
        $region51: #{tpu_custom_call.1} parent=39 // pred_region
          %315 = dma.done [#allocation6], 16
        $region52: #{tpu_custom_call.1} parent=39 // pred_fallthru
          _
        // Predicated region
        $region53: #{tpu_custom_call.1} parent=39 // pred_check
          %p316 = pneg %p127
        $region54: #{tpu_custom_call.1} parent=39 // pred_check_branch
          %318 = sbr.rel (%p316) target = $region56
        $region55: #{tpu_custom_call.1} parent=39 // pred_region
          %319 = dma.done [#allocation9], 16
        $region56: #{tpu_custom_call.1} parent=39 // pred_fallthru
          _
        // Predicated region
        $region57: #{tpu_custom_call.1} parent=39 // pred_check
          %p320 = pneg %p148
        $region58: #{tpu_custom_call.1} parent=39 // pred_check_branch
          %322 = sbr.rel (%p320) target = $region60
        $region59: #{tpu_custom_call.1} parent=39 // pred_region
          %323 = dma.done [#allocation9], 1024
        $region60: #{tpu_custom_call.1} parent=39 // pred_fallthru
          _
        %s324 = sand.u32 %s51, 1
        %s325 = scalar_lea.sflag [#allocation3], %s324
        %s326 = sand.u32 %s51, 1
        %s327 = smul.addr %s326, 32
        %s328 = scalar_lea.vmem [#allocation2], %s327
        %p329 = pneg %p64
        %p330 = pneg %p61
        %p331 = pneg %p85
        %p332 = pneg %p82
        %p333 = pneg %p106
        %p334 = pneg %p103
        %p335 = pneg %p127
        %p336 = pneg %p124
        %p337 = pneg %p148
        %p338 = pneg %p145
        %p339 = pneg %p178
        %p340 = pneg %p175
        %s341 = sand.u32 %s165, 1
        %s342 = scalar_lea.sflag [#allocation4], %s341
        %s343 = sand.u32 %s165, 1
        %s344 = smul.addr %s343, 32
        %s345 = scalar_lea.vmem [#allocation11], %s344
        %p346 = pneg %p204
        %p347 = pneg %p201
        %s348 = smul.u32 %s31, 2
        %s349 = sadd.s32 %s348, %s32
        %s350 = smul.u32 8, %s349
        %s351 = smul.u32 %s31, 2
        %s352 = sadd.s32 %s351, %s32
        %s353 = smul.u32 8, %s352
        %p355 = scmp.eq.s32.totalorder %s32, 0
        // Predicated region
        $region61: #{tpu_custom_call.1} parent=39 // pred_check
          %p356 = pneg %p355
        $region62: #{tpu_custom_call.1} parent=39 // pred_check_branch
          %358 = sbr.rel (%p356) target = $region64
        $region63: #{tpu_custom_call.1} parent=39 // pred_region
          %359 = vst [vmem:[#allocation12] sm:$0x3] 0.0
        $region64: #{tpu_custom_call.1} parent=39 // pred_fallthru
          _
        %v360 = vld [vmem:[%s303] sm:$0xf]
        %v361 = vld [vmem:[%s303 + $0x4] sm:$0xf]
        %v362 = vld [vmem:[%s303 + $0x8] sm:$0xf]
        %v363 = vld [vmem:[%s303 + $0xc] sm:$0xf]
        %v364 = vld [vmem:[%s303 + $0x10] sm:$0xf]
        %v365 = vld [vmem:[%s303 + $0x14] sm:$0xf]
        %v366 = vld [vmem:[%s303 + $0x18] sm:$0xf]
        %v367 = vld [vmem:[%s303 + $0x1c] sm:$0xf]
        %v368 = vld [vmem:[#allocation5] sm:$0xf]
        %v377 = vunpack.c.l.b16 %v360
        %v378 = vunpack.c.l.b16 %v361
        %v379 = vunpack.c.l.b16 %v362
        %v380 = vunpack.c.l.b16 %v363
        %v381 = vunpack.c.l.b16 %v364
        %v382 = vunpack.c.l.b16 %v365
        %v383 = vunpack.c.l.b16 %v366
        %v384 = vunpack.c.l.b16 %v367
        %v385 = vpack.c.b16 %v378, %v377
        %v386 = vpack.c.b16 %v380, %v379
        %v387 = vpack.c.b16 %v382, %v381
        %v388 = vpack.c.b16 %v384, %v383
        %vm389 = vcmask 64512
        %v391 = vsel %vm389, %v385, 0
        %v394 = vsel %vm389, %v386, 0
        %v397 = vsel %vm389, %v387, 0
        %v400 = vsel %vm389, %v388, 0
        %vm402 = vcmask 1043456
        %v404 = vsel %vm402, %v368, 0
        %406 = vmatprep.subr.bf16.mxu0 0
        %407 = vmatpush1.bf16.msra.mxu0 %v404
        %408 = vmatprep.subr.bf16.mxu0 0
        %409 = vmatpush1.bf16.msra.mxu0 0
        %410 = vmatprep.subr.bf16.mxu0 0
        %411 = vmatpush1.bf16.msra.mxu0 0
        %412 = vmatprep.subr.bf16.mxu0 0
        %413 = vmatpush1.bf16.msra.mxu0 0
        %414 = vmatprep.subr.bf16.mxu0 0
        %415 = vmatpush1.bf16.msra.mxu0 0
        %416 = vmatprep.subr.bf16.mxu0 0
        %417 = vmatpush1.bf16.msra.mxu0 0
        %418 = vmatprep.subr.bf16.mxu0 0
        %419 = vmatpush1.bf16.msra.mxu0 0
        %420 = vmatprep.subr.bf16.mxu0 0
        %421 = vmatpush1.bf16.msra.mxu0 0
        %422 = vmatprep.subr.bf16.mxu0 0
        %423 = vmatpush1.bf16.msra.mxu0 0
        %424 = vmatprep.subr.bf16.mxu0 0
        %425 = vmatpush1.bf16.msra.mxu0 0
        %426 = vmatprep.subr.bf16.mxu0 0
        %427 = vmatpush1.bf16.msra.mxu0 0
        %428 = vmatprep.subr.bf16.mxu0 0
        %429 = vmatpush1.bf16.msra.mxu0 0
        %430 = vmatprep.subr.bf16.mxu0 0
        %431 = vmatpush1.bf16.msra.mxu0 0
        %432 = vmatprep.subr.bf16.mxu0 0
        %433 = vmatpush1.bf16.msra.mxu0 0
        %434 = vmatprep.subr.bf16.mxu0 0
        %435 = vmatpush1.bf16.msra.mxu0 0
        %436 = vmatprep.subr.bf16.mxu0 0
        %437 = vmatpush1.bf16.msra.mxu0 0
        %438 = vmatprep.mubr.bf16.mxu0 0
        %439 = vmatmul.mubr.bf16.gmra.mrb[0].mxu0 %v391
        %v440 = vpop.f32.mrb[0].mxu0
        %v441 = vadd.f32 0.0, %v440
        %v442 = vpop.f32.mrb[0].mxu0
        %v443 = vpop.f32.mrb[0].mxu0
        %v444 = vadd.f32 0.0, %v443
        %v445 = vpop.f32.mrb[0].mxu0
        %446 = vmatprep.mubr.bf16.mxu0 0
        %447 = vmatmul.mubr.bf16.gmra.mrb[0].mxu0 %v394
        %v448 = vpop.f32.mrb[0].mxu0
        %v449 = vadd.f32 0.0, %v448
        %v450 = vpop.f32.mrb[0].mxu0
        %v451 = vpop.f32.mrb[0].mxu0
        %v452 = vadd.f32 0.0, %v451
        %v453 = vpop.f32.mrb[0].mxu0
        %454 = vmatprep.mubr.bf16.mxu0 0
        %455 = vmatmul.mubr.bf16.gmra.mrb[0].mxu0 %v397
        %v456 = vpop.f32.mrb[0].mxu0
        %v457 = vadd.f32 0.0, %v456
        %v458 = vpop.f32.mrb[0].mxu0
        %v459 = vpop.f32.mrb[0].mxu0
        %v460 = vadd.f32 0.0, %v459
        %v461 = vpop.f32.mrb[0].mxu0
        %462 = vmatprep.mubr.bf16.mxu0 0
        %463 = vmatmul.mubr.bf16.gmra.mrb[0].mxu0 %v400
        %v464 = vpop.f32.mrb[0].mxu0
        %v465 = vadd.f32 0.0, %v464
        %v466 = vpop.f32.mrb[0].mxu0
        %v467 = vpop.f32.mrb[0].mxu0
        %v468 = vadd.f32 0.0, %v467
        %v469 = vpop.f32.mrb[0].mxu0
        %470 = vdwg.mxu0
        %v471 = vld [vmem:[#allocation7] sm:$0x1]
        %v473 = vlaneseq
        %v474 = vshrl.u32 %v473, 7
        %v475 = vsub.s32 0, %v474
        %v476 = vrot.slane %v471, %v475
        %v478 = vmul.f32 %v441, %v476
        %v479 = vmul.f32 %v444, %v476
        %v480 = vmul.f32 %v449, %v476
        %v481 = vmul.f32 %v452, %v476
        %v482 = vmul.f32 %v457, %v476
        %v483 = vmul.f32 %v460, %v476
        %v484 = vmul.f32 %v465, %v476
        %v485 = vmul.f32 %v468, %v476
        %v486 = vld [vmem:[#allocation8] sm:$0x1]
        %v488 = vlaneseq
        %v489 = vshrl.u32 %v488, 7
        %v490 = vsub.s32 0, %v489
        %v491 = vrot.slane %v486, %v490
        %v493 = vadd.f32 %v478, %v491
        %v494 = vadd.f32 %v479, %v491
        %v495 = vadd.f32 %v480, %v491
        %v496 = vadd.f32 %v481, %v491
        %v497 = vadd.f32 %v482, %v491
        %v498 = vadd.f32 %v483, %v491
        %v499 = vadd.f32 %v484, %v491
        %v500 = vadd.f32 %v485, %v491
        %v501 = vmax.f32 %v493, 0.0
        %v502 = vmax.f32 %v494, 0.0
        %v503 = vmax.f32 %v495, 0.0
        %v504 = vmax.f32 %v496, 0.0
        %v505 = vmax.f32 %v497, 0.0
        %v506 = vmax.f32 %v498, 0.0
        %v507 = vmax.f32 %v499, 0.0
        %v508 = vmax.f32 %v500, 0.0
        %v509 = vpack.c.bf16 %v502, %v501
        %v510 = vpack.c.bf16 %v504, %v503
        %v511 = vpack.c.bf16 %v506, %v505
        %v512 = vpack.c.bf16 %v508, %v507
        %v517 = vunpack.c.l.b16 %v509
        %v518 = vunpack.c.h.b16 %v509
        %v519 = vunpack.c.l.b16 %v510
        %v520 = vunpack.c.h.b16 %v510
        %v521 = vunpack.c.l.b16 %v511
        %v522 = vunpack.c.h.b16 %v511
        %v523 = vunpack.c.l.b16 %v512
        %v524 = vunpack.c.h.b16 %v512
        %v525 = vpack.c.b16 %v517, %v517
        %v526 = vpack.c.b16 %v518, %v518
        %v527 = vpack.c.b16 %v519, %v519
        %v528 = vpack.c.b16 %v520, %v520
        %v529 = vpack.c.b16 %v521, %v521
        %v530 = vpack.c.b16 %v522, %v522
        %v531 = vpack.c.b16 %v523, %v523
        %v532 = vpack.c.b16 %v524, %v524
        %541 = vst [vmem:[%s345] sm:$0xf] %v525
        %542 = vst [vmem:[%s345 + $0x4] sm:$0xf] %v526
        %543 = vst [vmem:[%s345 + $0x8] sm:$0xf] %v527
        %544 = vst [vmem:[%s345 + $0xc] sm:$0xf] %v528
        %545 = vst [vmem:[%s345 + $0x10] sm:$0xf] %v529
        %546 = vst [vmem:[%s345 + $0x14] sm:$0xf] %v530
        %547 = vst [vmem:[%s345 + $0x18] sm:$0xf] %v531
        %548 = vst [vmem:[%s345 + $0x1c] sm:$0xf] %v532
        %v549 = vld [vmem:[#allocation10] sm:$0xf]
        %v550 = vld [vmem:[#allocation10 + $0x4] sm:$0xf]
        %v551 = vld [vmem:[#allocation10 + $0x8] sm:$0xf]
        %v552 = vld [vmem:[#allocation10 + $0xc] sm:$0xf]
        %v553 = vld [vmem:[#allocation10 + $0x10] sm:$0xf]
        %v554 = vld [vmem:[#allocation10 + $0x14] sm:$0xf]
        %v555 = vld [vmem:[#allocation10 + $0x18] sm:$0xf]
        %v556 = vld [vmem:[#allocation10 + $0x1c] sm:$0xf]
        %v557 = vld [vmem:[#allocation10 + $0x20] sm:$0xf]
        %v558 = vld [vmem:[#allocation10 + $0x24] sm:$0xf]
        %v559 = vld [vmem:[#allocation10 + $0x28] sm:$0xf]
        %v560 = vld [vmem:[#allocation10 + $0x2c] sm:$0xf]
        %v561 = vld [vmem:[#allocation10 + $0x30] sm:$0xf]
        %v562 = vld [vmem:[#allocation10 + $0x34] sm:$0xf]
        %v563 = vld [vmem:[#allocation10 + $0x38] sm:$0xf]
        %v564 = vld [vmem:[#allocation10 + $0x3c] sm:$0xf]
        %v581 = vunpack.c.l.b16 %v549
        %v582 = vunpack.c.l.b16 %v550
        %v583 = vunpack.c.l.b16 %v551
        %v584 = vunpack.c.l.b16 %v552
        %v585 = vunpack.c.l.b16 %v553
        %v586 = vunpack.c.l.b16 %v554
        %v587 = vunpack.c.l.b16 %v555
        %v588 = vunpack.c.l.b16 %v556
        %v589 = vunpack.c.l.b16 %v557
        %v590 = vunpack.c.l.b16 %v558
        %v591 = vunpack.c.l.b16 %v559
        %v592 = vunpack.c.l.b16 %v560
        %v593 = vunpack.c.l.b16 %v561
        %v594 = vunpack.c.l.b16 %v562
        %v595 = vunpack.c.l.b16 %v563
        %v596 = vunpack.c.l.b16 %v564
        %v597 = vpack.c.b16 %v582, %v581
        %v598 = vpack.c.b16 %v584, %v583
        %v599 = vpack.c.b16 %v586, %v585
        %v600 = vpack.c.b16 %v588, %v587
        %v601 = vpack.c.b16 %v590, %v589
        %v602 = vpack.c.b16 %v592, %v591
        %v603 = vpack.c.b16 %v594, %v593
        %v604 = vpack.c.b16 %v596, %v595
        %613 = vmatprep.subr.bf16.mxu0 0
        %614 = vmatpush1.bf16.msra.mxu0 %v597
        %615 = vmatprep.subr.bf16.mxu0 0
        %616 = vmatpush1.bf16.msra.mxu0 %v598
        %617 = vmatprep.subr.bf16.mxu0 0
        %618 = vmatpush1.bf16.msra.mxu0 %v599
        %619 = vmatprep.subr.bf16.mxu0 0
        %620 = vmatpush1.bf16.msra.mxu0 %v600
        %621 = vmatprep.subr.bf16.mxu0 0
        %622 = vmatpush1.bf16.msra.mxu0 %v601
        %623 = vmatprep.subr.bf16.mxu0 0
        %624 = vmatpush1.bf16.msra.mxu0 %v602
        %625 = vmatprep.subr.bf16.mxu0 0
        %626 = vmatpush1.bf16.msra.mxu0 %v603
        %627 = vmatprep.subr.bf16.mxu0 0
        %628 = vmatpush1.bf16.msra.mxu0 %v604
        %629 = vmatprep.subr.bf16.mxu0 0
        %630 = vmatpush1.bf16.msra.mxu0 0
        %631 = vmatprep.subr.bf16.mxu0 0
        %632 = vmatpush1.bf16.msra.mxu0 0
        %633 = vmatprep.subr.bf16.mxu0 0
        %634 = vmatpush1.bf16.msra.mxu0 0
        %635 = vmatprep.subr.bf16.mxu0 0
        %636 = vmatpush1.bf16.msra.mxu0 0
        %637 = vmatprep.subr.bf16.mxu0 0
        %638 = vmatpush1.bf16.msra.mxu0 0
        %639 = vmatprep.subr.bf16.mxu0 0
        %640 = vmatpush1.bf16.msra.mxu0 0
        %641 = vmatprep.subr.bf16.mxu0 0
        %642 = vmatpush1.bf16.msra.mxu0 0
        %643 = vmatprep.subr.bf16.mxu0 0
        %644 = vmatpush1.bf16.msra.mxu0 0
        %645 = vmatprep.mubr.bf16.mxu0 0
        %646 = vmatmul.mubr.bf16.gmra.mrb[0].mxu0 %v509
        %v647 = vpop.f32.mrb[0].mxu0
        %v648 = vadd.f32 0.0, %v647
        %v649 = vpop.f32.mrb[0].mxu0
        %v650 = vpop.f32.mrb[0].mxu0
        %v651 = vadd.f32 0.0, %v650
        %v652 = vpop.f32.mrb[0].mxu0
        %653 = vmatprep.mubr.bf16.mxu0 0
        %654 = vmatmul.mubr.bf16.gmra.mrb[0].mxu0 %v510
        %v655 = vpop.f32.mrb[0].mxu0
        %v656 = vadd.f32 0.0, %v655
        %v657 = vpop.f32.mrb[0].mxu0
        %v658 = vpop.f32.mrb[0].mxu0
        %v659 = vadd.f32 0.0, %v658
        %v660 = vpop.f32.mrb[0].mxu0
        %661 = vmatprep.mubr.bf16.mxu0 0
        %662 = vmatmul.mubr.bf16.gmra.mrb[0].mxu0 %v511
        %v663 = vpop.f32.mrb[0].mxu0
        %v664 = vadd.f32 0.0, %v663
        %v665 = vpop.f32.mrb[0].mxu0
        %v666 = vpop.f32.mrb[0].mxu0
        %v667 = vadd.f32 0.0, %v666
        %v668 = vpop.f32.mrb[0].mxu0
        %669 = vmatprep.mubr.bf16.mxu0 0
        %670 = vmatmul.mubr.bf16.gmra.mrb[0].mxu0 %v512
        %v671 = vpop.f32.mrb[0].mxu0
        %v672 = vadd.f32 0.0, %v671
        %v673 = vpop.f32.mrb[0].mxu0
        %v674 = vpop.f32.mrb[0].mxu0
        %v675 = vadd.f32 0.0, %v674
        %v676 = vpop.f32.mrb[0].mxu0
        %677 = vdwg.mxu0
        %v678 = vld [vmem:[#allocation12] sm:$0x3]
        %v679 = vadd.f32 %v648, %v651
        %v680 = vadd.f32 %v679, %v656
        %v681 = vadd.f32 %v680, %v659
        %v682 = vadd.f32 %v681, %v664
        %v683 = vadd.f32 %v682, %v667
        %v684 = vadd.f32 %v683, %v672
        %v685 = vadd.f32 %v684, %v675
        %v686 = vrot.slane %v685, 4
        %v687 = vadd.f32 %v685, %v686
        %v688 = vrot.slane %v687, 2
        %v689 = vadd.f32 %v687, %v688
        %v690 = vrot.slane %v689, 1
        %v691 = vadd.f32 %v689, %v690
        %v692 = vmul.f32 %v648, %v648
        %v693 = vmul.f32 %v651, %v651
        %v694 = vmul.f32 %v656, %v656
        %v695 = vmul.f32 %v659, %v659
        %v696 = vmul.f32 %v664, %v664
        %v697 = vmul.f32 %v667, %v667
        %v698 = vmul.f32 %v672, %v672
        %v699 = vmul.f32 %v675, %v675
        %v700 = vadd.f32 %v692, %v693
        %v701 = vadd.f32 %v700, %v694
        %v702 = vadd.f32 %v701, %v695
        %v703 = vadd.f32 %v702, %v696
        %v704 = vadd.f32 %v703, %v697
        %v705 = vadd.f32 %v704, %v698
        %v706 = vadd.f32 %v705, %v699
        %v707 = vrot.slane %v706, 4
        %v708 = vadd.f32 %v706, %v707
        %v709 = vrot.slane %v708, 2
        %v710 = vadd.f32 %v708, %v709
        %v711 = vrot.slane %v710, 1
        %v712 = vadd.f32 %v710, %v711
        %vm713 = vcmask 1040384
        %v714 = vsel %vm713, %v691, %v712
        %v715 = vadd.f32 %v678, %v714
        %716 = vst [vmem:[#allocation12] sm:$0x3] %v715
        %s717 = sand.u32 %s165, 1
        %s718 = scalar_lea.sflag [#allocation4], %s717
        %s719 = sand.u32 %s165, 1
        %s720 = smul.addr %s719, 32
        %s721 = scalar_lea.vmem [#allocation11], %s720
        // Predicated region
        $region65: #{tpu_custom_call.1} parent=39 // pred_check
          %p722 = pneg %p175
        $region66: #{tpu_custom_call.1} parent=39 // pred_check_branch
          %724 = sbr.rel (%p722) target = $region68
        $region67: #{tpu_custom_call.1} parent=39 // pred_region
          %s725 = smul.u32 %s31, 2
          %s726 = sadd.s32 %s725, %s32
          %s727 = smul.u32 8, %s726
          %s729 = ssub.s32 512, 512
          %730 = vsyncadd %s718, %s729
          %s731 = smul.addr %s727, 64
          %s732 = scalar_lea.hbm %s5, %s731
          %s733 = sshll.u32 %s721, 4
          %s734 = int_to_ptr.vmem [resolvable:$true] %s733
          %739 = dma.vmem_to_hbm [thread:$0]  %s734, 512, %s732, %s718, 64, 64, 4
        $region68: #{tpu_custom_call.1} parent=39 // pred_fallthru
          _
        // Predicated region
        $region69: #{tpu_custom_call.1} parent=39 // pred_check
          %p740 = pneg %p201
        $region70: #{tpu_custom_call.1} parent=39 // pred_check_branch
          %742 = sbr.rel (%p740) target = $region72
        $region71: #{tpu_custom_call.1} parent=39 // pred_region
          %s744 = ssub.s32 32, 32
          %745 = vsyncadd [#allocation13], %s744
          %s746 = smul.addr %s31, 32
          %s747 = scalar_lea.hbm %s6, %s746
          %s749 = sshll.u32 [#allocation12], 4
          %s750 = int_to_ptr.vmem [resolvable:$true] %s749
          %752 = dma.vmem_to_hbm [thread:$0]  %s750, 32, %s747, [#allocation13]
        $region72: #{tpu_custom_call.1} parent=39 // pred_fallthru
          _
        // Predicated region
        $region73: #{tpu_custom_call.1} parent=39 // pred_check
          %p753 = pneg %p201
        $region74: #{tpu_custom_call.1} parent=39 // pred_check_branch
          %755 = sbr.rel (%p753) target = $region76
        $region75: #{tpu_custom_call.1} parent=39 // pred_region
          %756 = dma.done [#allocation13], 32
        $region76: #{tpu_custom_call.1} parent=39 // pred_fallthru
          _
      $region40: #{tpu_custom_call.1} parent=5 // pred_fallthru
        _
      %p757 = scmp.le.s32.totalorder 2, %s22
      // Predicated region
      $region77: #{tpu_custom_call.1} parent=5 // pred_check
        %p758 = pneg %p757
      $region78: #{tpu_custom_call.1} parent=5 // pred_check_branch
        %760 = sbr.rel (%p758) target = $region80
      $region79: #{tpu_custom_call.1} parent=5 // pred_region
        %s761 = ssub.s32 %s22, 2
        // Predicated region
        $region81: #{tpu_custom_call.1} parent=79 // pred_check
          %p762 = pneg %p181
        $region82: #{tpu_custom_call.1} parent=79 // pred_check_branch
          %764 = sbr.rel (%p762) target = $region84
        $region83: #{tpu_custom_call.1} parent=79 // pred_region
          %s765 = sand.u32 %s166, 1
          %s766 = scalar_lea.sflag [#allocation4], %s765
          %s767 = sand.u32 %s166, 1
          %s768 = smul.addr %s767, 32
          %s769 = scalar_lea.vmem [#allocation11], %s768
          %770 = dma.done %s766, 512
        $region84: #{tpu_custom_call.1} parent=79 // pred_fallthru
          _
      $region80: #{tpu_custom_call.1} parent=5 // pred_fallthru
        _
    $region6: #{tpu_custom_call.1} parent=1 // loop_footer
      %s26 = sadd.s32 1, %s22
    $region7: #{tpu_custom_call.1} parent=1 // loop_footer_branch
      %21 = sbr.rel target = $region3
    $region8: #{tpu_custom_call.1} parent=1 // loop_exit
      _
    %771 = vsyncpa [#allocation3], 1
    %s772 = scalar_lea.sflag [#allocation3], 1
    %773 = vsyncpa %s772, 1
    %774 = vsyncpa [#allocation6], 1
    %775 = vsyncpa [#allocation9], 1
    %776 = vsyncpa [#allocation4], 1
    %s777 = scalar_lea.sflag [#allocation4], 1
    %778 = vsyncpa %s777, 1
    %779 = vsyncpa [#allocation13], 1

</llo_original>
